<compile_context>
chip_gen: v7x
topology: tpu7x:2x2x1
jax: 0.10.0
libtpu: 0.0.40
codegen_flags: <defaults>
</compile_context>

<pallas_src>
import jax
import jax.numpy as jnp
from jax.experimental import pallas as pl
from jax.experimental.pallas import tpu as pltpu

# ---- module / example hyper-parameters ----
B = 2          # batch
C_IN = 4       # in_channels
C_MID = 8      # mid_channels (defaults to out_channels in the module)
C_OUT = 8      # out_channels
H = 16
W = 16
KH = KW = 3    # 3x3 kernels, padding=1 ("same")


def double_conv_kernel(x_ref, w1_ref, b1_ref, w2_ref, b2_ref, o_ref):
    # x_ref : (1, H, W*C_IN)        one image, NHWC with (W, C) folded on lanes
    # w1_ref: (3, W*C_IN, W*C_MID)  banded weight matrix per kernel row dy
    # b1_ref: (1, W*C_MID)          bias pre-tiled across W
    # w2_ref: (3, W*C_MID, W*C_OUT)
    # b2_ref: (1, W*C_OUT)
    # o_ref : (H, W*C_OUT)          lane-dense output rows for this image
    x = x_ref[0]                                            # (H, W*C_IN)

    # Row-shift matrices: (s_dn @ A)[y] = A[y-1] (row 0 -> 0),
    #                     (s_up @ A)[y] = A[y+1] (row H-1 -> 0).
    # Built from iota each step (trivial); keeps the y-direction "same" padding
    # on the MXU instead of needing a padded scratch or unaligned concats.
    r = jax.lax.broadcasted_iota(jnp.int32, (H, H), 0)
    k = jax.lax.broadcasted_iota(jnp.int32, (H, H), 1)
    s_dn = (k == r - 1).astype(jnp.float32)
    s_up = (k == r + 1).astype(jnp.float32)

    def conv3x3_relu(inp, w_ref, b_ref):
        # inp: (H, W*Cin) dense slab -> (H, W*Cout) dense slab
        above = jnp.dot(s_dn, inp, preferred_element_type=jnp.float32)  # row y-1
        below = jnp.dot(s_up, inp, preferred_element_type=jnp.float32)  # row y+1
        out = (jnp.dot(above, w_ref[0], preferred_element_type=jnp.float32)
               + jnp.dot(inp,  w_ref[1], preferred_element_type=jnp.float32)
               + jnp.dot(below, w_ref[2], preferred_element_type=jnp.float32))
        return jnp.maximum(out + b_ref[...], 0.0)           # bias + ReLU, dense

    h = conv3x3_relu(x, w1_ref, b1_ref)                     # (H, W*C_MID) = (16, 128)
    y = conv3x3_relu(h, w2_ref, b2_ref)                     # (H, W*C_OUT) = (16, 128)
    o_ref[...] = y.astype(o_ref.dtype)                      # unmasked 128-lane stores


def prepare_conv_params(w, b, width):
    """One-time host prep.

    PyTorch OIHW weights (C_out, C_in, 3, 3) -> banded matrices (3, W*C_in, W*C_out):
        W_dy[xin*C_in + ci, x*C_out + co] = w[co, ci, dy, xin - x + 1]
    for |xin - x| <= 1, else 0 (x-direction "same" padding absorbed as zeros).
    Bias -> (1, W*C_out) tiled so the add happens in the folded dense layout.
    """
    c_out, c_in, kh, kw = w.shape
    wt = jnp.transpose(w, (2, 3, 1, 0))                     # (dy, dx, ci, co)
    xin = jnp.arange(width)[:, None]                        # (W, 1)
    xout = jnp.arange(width)[None, :]                       # (1, W)
    dx = xin - xout + 1                                     # (W, W)
    valid = ((dx >= 0) & (dx <= kw - 1)).astype(w.dtype)
    dx_c = jnp.clip(dx, 0, kw - 1)
    band = wt[:, dx_c, :, :]                                # (3, W, W, ci, co)
    band = band * valid[None, :, :, None, None]
    band = jnp.transpose(band, (0, 1, 3, 2, 4))             # (3, W, ci, W, co)
    w_mats = band.reshape(kh, width * c_in, width * c_out)
    b_row = jnp.tile(b, (width,)).reshape(1, width * c_out)
    return w_mats, b_row


def double_conv(x_nchw, w1_mats, b1_row, w2_mats, b2_row):
    """x_nchw: (B, C_IN, H, W) float32 (same layout as the PyTorch module).
    Returns (B, C_OUT, H, W)."""
    # Layout-only wrapper work: NCHW -> (B, H, W*C_IN); no pad, no extra HBM array.
    x_folded = jnp.transpose(x_nchw, (0, 2, 3, 1)).reshape(B, H, W * C_IN)

    y2d = pl.pallas_call(
        double_conv_kernel,
        out_shape=jax.ShapeDtypeStruct((B * H, W * C_OUT), x_nchw.dtype),
        grid=(B,),
        in_specs=[
            pl.BlockSpec((1, H, W * C_IN), lambda b: (b, 0, 0)),
            pl.BlockSpec((KH, W * C_IN, W * C_MID), lambda b: (0, 0, 0)),
            pl.BlockSpec((1, W * C_MID), lambda b: (0, 0)),
            pl.BlockSpec((KH, W * C_MID, W * C_OUT), lambda b: (0, 0, 0)),
            pl.BlockSpec((1, W * C_OUT), lambda b: (0, 0)),
        ],
        out_specs=pl.BlockSpec((H, W * C_OUT), lambda b: (b, 0)),
        compiler_params=pltpu.CompilerParams(
            dimension_semantics=("parallel",)),
    )(x_folded, w1_mats, b1_row, w2_mats, b2_row)

    # Free reshapes back to the module's NCHW output layout.
    return jnp.transpose(y2d.reshape(B, H, W, C_OUT), (0, 3, 1, 2))


def reference(x_nchw, w1, b1, w2, b2):
    """Plain-JAX reference mirroring the PyTorch forward (NCHW, OIHW)."""
    dn = jax.lax.conv_dimension_numbers(x_nchw.shape, w1.shape,
                                        ('NCHW', 'OIHW', 'NCHW'))
    h = jax.lax.conv_general_dilated(x_nchw, w1, (1, 1), ((1, 1), (1, 1)),
                                     dimension_numbers=dn)
    h = jax.nn.relu(h + b1.reshape(1, -1, 1, 1))
    y = jax.lax.conv_general_dilated(h, w2, (1, 1), ((1, 1), (1, 1)),
                                     dimension_numbers=dn)
    return jax.nn.relu(y + b2.reshape(1, -1, 1, 1))


if __name__ == "__main__":
    key = jax.random.PRNGKey(0)
    kx, k1, k2, k3, k4 = jax.random.split(key, 5)

    x = jax.random.normal(kx, (B, C_IN, H, W), dtype=jnp.float32)

    # PyTorch-style uniform(-1/sqrt(fan_in), 1/sqrt(fan_in)) init, fan_in = C*KH*KW
    bound1 = 1.0 / ((C_IN * KH * KW) ** 0.5)
    w1 = jax.random.uniform(k1, (C_MID, C_IN, KH, KW), jnp.float32, -bound1, bound1)
    b1 = jax.random.uniform(k2, (C_MID,), jnp.float32, -bound1, bound1)
    bound2 = 1.0 / ((C_MID * KH * KW) ** 0.5)
    w2 = jax.random.uniform(k3, (C_OUT, C_MID, KH, KW), jnp.float32, -bound2, bound2)
    b2 = jax.random.uniform(k4, (C_OUT,), jnp.float32, -bound2, bound2)

    # Banded-weight / tiled-bias prep done ONCE (hoisted out of the per-call path).
    w1_mats, b1_row = prepare_conv_params(w1, b1, W)
    w2_mats, b2_row = prepare_conv_params(w2, b2, W)

    run = jax.jit(double_conv)
    y = run(x, w1_mats, b1_row, w2_mats, b2_row)
    jax.block_until_ready(y)

    y_ref = reference(x, w1, b1, w2, b2)
    assert jnp.allclose(y, y_ref, atol=1e-4, rtol=1e-4), "mismatch vs reference"

    print("KERNEL_OK")
</pallas_src>

<mosaic_0001>
module attributes {stable_mosaic.version = 11 : i64} {
  func.func @double_conv_kernel(%arg0: i32, %arg1: memref<1x16x64xf32, #tpu.memory_space<vmem>>, %arg2: memref<3x64x128xf32, #tpu.memory_space<vmem>>, %arg3: memref<1x128xf32, #tpu.memory_space<vmem>>, %arg4: memref<3x128x128xf32, #tpu.memory_space<vmem>>, %arg5: memref<1x128xf32, #tpu.memory_space<vmem>>, %arg6: memref<16x128xf32, #tpu.memory_space<vmem>>) attributes {dimension_semantics = [#tpu.dimension_semantics<parallel>], iteration_bounds = array<i64: 2>, scalar_prefetch = 0 : i64, scratch_operands = 0 : i64, tpu.core_type = #tpu.core_type<tc>, window_params = [{transform_indices = @transform_0, window_bounds = array<i64: 1, 16, 64>}, {pipeline_mode = #tpu.pipeline_mode<synchronous>, transform_indices = @transform_1, window_bounds = array<i64: 3, 64, 128>}, {pipeline_mode = #tpu.pipeline_mode<synchronous>, transform_indices = @transform_2, window_bounds = array<i64: 1, 128>}, {pipeline_mode = #tpu.pipeline_mode<synchronous>, transform_indices = @transform_3, window_bounds = array<i64: 3, 128, 128>}, {pipeline_mode = #tpu.pipeline_mode<synchronous>, transform_indices = @transform_4, window_bounds = array<i64: 1, 128>}, {transform_indices = @transform_5, window_bounds = array<i64: 16, 128>}]} {
    %c0 = arith.constant 0 : index
    %c0_0 = arith.constant 0 : index
    %c0_1 = arith.constant 0 : index
    %0 = vector.load %arg1[%c0, %c0_0, %c0_1] : memref<1x16x64xf32, #tpu.memory_space<vmem>>, vector<1x16x64xf32>
    %1 = vector.shape_cast %0 : vector<1x16x64xf32> to vector<16x64xf32>
    %2 = tpu.iota {dimensions = array<i32: 0>} : vector<16x16xi32>
    %3 = tpu.iota {dimensions = array<i32: 1>} : vector<16x16xi32>
    %c1_i32 = arith.constant 1 : i32
    %4 = vector.broadcast %c1_i32 : i32 to vector<16x16xi32>
    %5 = arith.subi %2, %4 : vector<16x16xi32>
    %6 = arith.cmpi eq, %3, %5 : vector<16x16xi32>
    %7 = arith.extui %6 : vector<16x16xi1> to vector<16x16xi32>
    %8 = arith.sitofp %7 : vector<16x16xi32> to vector<16x16xf32>
    %c1_i32_2 = arith.constant 1 : i32
    %9 = vector.broadcast %c1_i32_2 : i32 to vector<16x16xi32>
    %10 = arith.addi %2, %9 : vector<16x16xi32>
    %11 = arith.cmpi eq, %3, %10 : vector<16x16xi32>
    %12 = arith.extui %11 : vector<16x16xi1> to vector<16x16xi32>
    %13 = arith.sitofp %12 : vector<16x16xi32> to vector<16x16xf32>
    %cst = arith.constant dense<0.000000e+00> : vector<16x64xf32>
    %14 = tpu.matmul %8, %1, %cst {dimension_numbers = #tpu.dot_dimension_numbers<[1], [0], [0], [1], [0, 0, 1, 1], [], []>} : vector<16x16xf32>, vector<16x64xf32>, vector<16x64xf32> -> vector<16x64xf32>
    %cst_3 = arith.constant dense<0.000000e+00> : vector<16x64xf32>
    %15 = tpu.matmul %13, %1, %cst_3 {dimension_numbers = #tpu.dot_dimension_numbers<[1], [0], [0], [1], [0, 0, 1, 1], [], []>} : vector<16x16xf32>, vector<16x64xf32>, vector<16x64xf32> -> vector<16x64xf32>
    %c0_4 = arith.constant 0 : index
    %c0_5 = arith.constant 0 : index
    %c0_6 = arith.constant 0 : index
    %16 = vector.load %arg2[%c0_4, %c0_5, %c0_6] : memref<3x64x128xf32, #tpu.memory_space<vmem>>, vector<1x64x128xf32>
    %17 = vector.shape_cast %16 : vector<1x64x128xf32> to vector<64x128xf32>
    %cst_7 = arith.constant dense<0.000000e+00> : vector<16x128xf32>
    %18 = tpu.matmul %14, %17, %cst_7 {dimension_numbers = #tpu.dot_dimension_numbers<[1], [0], [0], [1], [0, 0, 1, 1], [], []>} : vector<16x64xf32>, vector<64x128xf32>, vector<16x128xf32> -> vector<16x128xf32>
    %c1 = arith.constant 1 : index
    %c0_8 = arith.constant 0 : index
    %c0_9 = arith.constant 0 : index
    %19 = vector.load %arg2[%c1, %c0_8, %c0_9] : memref<3x64x128xf32, #tpu.memory_space<vmem>>, vector<1x64x128xf32>
    %20 = vector.shape_cast %19 : vector<1x64x128xf32> to vector<64x128xf32>
    %cst_10 = arith.constant dense<0.000000e+00> : vector<16x128xf32>
    %21 = tpu.matmul %1, %20, %cst_10 {dimension_numbers = #tpu.dot_dimension_numbers<[1], [0], [0], [1], [0, 0, 1, 1], [], []>} : vector<16x64xf32>, vector<64x128xf32>, vector<16x128xf32> -> vector<16x128xf32>
    %22 = arith.addf %18, %21 : vector<16x128xf32>
    %c2 = arith.constant 2 : index
    %c0_11 = arith.constant 0 : index
    %c0_12 = arith.constant 0 : index
    %23 = vector.load %arg2[%c2, %c0_11, %c0_12] : memref<3x64x128xf32, #tpu.memory_space<vmem>>, vector<1x64x128xf32>
    %24 = vector.shape_cast %23 : vector<1x64x128xf32> to vector<64x128xf32>
    %cst_13 = arith.constant dense<0.000000e+00> : vector<16x128xf32>
    %25 = tpu.matmul %15, %24, %cst_13 {dimension_numbers = #tpu.dot_dimension_numbers<[1], [0], [0], [1], [0, 0, 1, 1], [], []>} : vector<16x64xf32>, vector<64x128xf32>, vector<16x128xf32> -> vector<16x128xf32>
    %26 = arith.addf %22, %25 : vector<16x128xf32>
    %c0_14 = arith.constant 0 : index
    %c0_15 = arith.constant 0 : index
    %27 = vector.load %arg3[%c0_14, %c0_15] : memref<1x128xf32, #tpu.memory_space<vmem>>, vector<1x128xf32>
    %28 = vector.broadcast %27 : vector<1x128xf32> to vector<16x128xf32>
    %29 = arith.addf %26, %28 : vector<16x128xf32>
    %cst_16 = arith.constant 0.000000e+00 : f32
    %30 = vector.broadcast %cst_16 : f32 to vector<16x128xf32>
    %31 = arith.maximumf %29, %30 : vector<16x128xf32>
    %cst_17 = arith.constant dense<0.000000e+00> : vector<16x128xf32>
    %32 = tpu.matmul %8, %31, %cst_17 {dimension_numbers = #tpu.dot_dimension_numbers<[1], [0], [0], [1], [0, 0, 1, 1], [], []>} : vector<16x16xf32>, vector<16x128xf32>, vector<16x128xf32> -> vector<16x128xf32>
    %cst_18 = arith.constant dense<0.000000e+00> : vector<16x128xf32>
    %33 = tpu.matmul %13, %31, %cst_18 {dimension_numbers = #tpu.dot_dimension_numbers<[1], [0], [0], [1], [0, 0, 1, 1], [], []>} : vector<16x16xf32>, vector<16x128xf32>, vector<16x128xf32> -> vector<16x128xf32>
    %c0_19 = arith.constant 0 : index
    %c0_20 = arith.constant 0 : index
    %c0_21 = arith.constant 0 : index
    %34 = vector.load %arg4[%c0_19, %c0_20, %c0_21] : memref<3x128x128xf32, #tpu.memory_space<vmem>>, vector<1x128x128xf32>
    %35 = vector.shape_cast %34 : vector<1x128x128xf32> to vector<128x128xf32>
    %cst_22 = arith.constant dense<0.000000e+00> : vector<16x128xf32>
    %36 = tpu.matmul %32, %35, %cst_22 {dimension_numbers = #tpu.dot_dimension_numbers<[1], [0], [0], [1], [0, 0, 1, 1], [], []>} : vector<16x128xf32>, vector<128x128xf32>, vector<16x128xf32> -> vector<16x128xf32>
    %c1_23 = arith.constant 1 : index
    %c0_24 = arith.constant 0 : index
    %c0_25 = arith.constant 0 : index
    %37 = vector.load %arg4[%c1_23, %c0_24, %c0_25] : memref<3x128x128xf32, #tpu.memory_space<vmem>>, vector<1x128x128xf32>
    %38 = vector.shape_cast %37 : vector<1x128x128xf32> to vector<128x128xf32>
    %cst_26 = arith.constant dense<0.000000e+00> : vector<16x128xf32>
    %39 = tpu.matmul %31, %38, %cst_26 {dimension_numbers = #tpu.dot_dimension_numbers<[1], [0], [0], [1], [0, 0, 1, 1], [], []>} : vector<16x128xf32>, vector<128x128xf32>, vector<16x128xf32> -> vector<16x128xf32>
    %40 = arith.addf %36, %39 : vector<16x128xf32>
    %c2_27 = arith.constant 2 : index
    %c0_28 = arith.constant 0 : index
    %c0_29 = arith.constant 0 : index
    %41 = vector.load %arg4[%c2_27, %c0_28, %c0_29] : memref<3x128x128xf32, #tpu.memory_space<vmem>>, vector<1x128x128xf32>
    %42 = vector.shape_cast %41 : vector<1x128x128xf32> to vector<128x128xf32>
    %cst_30 = arith.constant dense<0.000000e+00> : vector<16x128xf32>
    %43 = tpu.matmul %33, %42, %cst_30 {dimension_numbers = #tpu.dot_dimension_numbers<[1], [0], [0], [1], [0, 0, 1, 1], [], []>} : vector<16x128xf32>, vector<128x128xf32>, vector<16x128xf32> -> vector<16x128xf32>
    %44 = arith.addf %40, %43 : vector<16x128xf32>
    %c0_31 = arith.constant 0 : index
    %c0_32 = arith.constant 0 : index
    %45 = vector.load %arg5[%c0_31, %c0_32] : memref<1x128xf32, #tpu.memory_space<vmem>>, vector<1x128xf32>
    %46 = vector.broadcast %45 : vector<1x128xf32> to vector<16x128xf32>
    %47 = arith.addf %44, %46 : vector<16x128xf32>
    %cst_33 = arith.constant 0.000000e+00 : f32
    %48 = vector.broadcast %cst_33 : f32 to vector<16x128xf32>
    %49 = arith.maximumf %47, %48 : vector<16x128xf32>
    %c0_34 = arith.constant 0 : index
    %c0_35 = arith.constant 0 : index
    %50 = vector.load %arg6[%c0_34, %c0_35] : memref<16x128xf32, #tpu.memory_space<vmem>>, vector<16x128xf32>
    tpu.vector_store %arg6[%c0_34, %c0_35], %49 {strides = array<i32>} : memref<16x128xf32, #tpu.memory_space<vmem>>, vector<16x128xf32>,
    return
  }
  func.func @transform_0(%arg0: i32) -> (i32, i32, i32) {
    %c0_i32 = arith.constant 0 : i32
    %c0_i32_0 = arith.constant 0 : i32
    %c0_i32_1 = arith.constant 0 : i32
    return %arg0, %c0_i32, %c0_i32_0 : i32, i32, i32
  }
  func.func @transform_1(%arg0: i32) -> (i32, i32, i32) {
    %c0_i32 = arith.constant 0 : i32
    %c0_i32_0 = arith.constant 0 : i32
    %c0_i32_1 = arith.constant 0 : i32
    %c0_i32_2 = arith.constant 0 : i32
    return %c0_i32, %c0_i32_0, %c0_i32_1 : i32, i32, i32
  }
  func.func @transform_2(%arg0: i32) -> (i32, i32) {
    %c0_i32 = arith.constant 0 : i32
    %c0_i32_0 = arith.constant 0 : i32
    %c0_i32_1 = arith.constant 0 : i32
    return %c0_i32, %c0_i32_0 : i32, i32
  }
  func.func @transform_3(%arg0: i32) -> (i32, i32, i32) {
    %c0_i32 = arith.constant 0 : i32
    %c0_i32_0 = arith.constant 0 : i32
    %c0_i32_1 = arith.constant 0 : i32
    %c0_i32_2 = arith.constant 0 : i32
    return %c0_i32, %c0_i32_0, %c0_i32_1 : i32, i32, i32
  }
  func.func @transform_4(%arg0: i32) -> (i32, i32) {
    %c0_i32 = arith.constant 0 : i32
    %c0_i32_0 = arith.constant 0 : i32
    %c0_i32_1 = arith.constant 0 : i32
    return %c0_i32, %c0_i32_0 : i32, i32
  }
  func.func @transform_5(%arg0: i32) -> (i32, i32) {
    %c0_i32 = arith.constant 0 : i32
    %c0_i32_0 = arith.constant 0 : i32
    return %arg0, %c0_i32 : i32, i32
  }
}

</mosaic_0001>

<llo_original>
// kernel: double_conv.1
$region0: #{double_conv.1}
  #allocation0 [shape = 'u32[]', space=smem, size = 0x4, offset = 0x4, fixed_abs, tag = 'smem constant byte address 0x4 - core index']
  #allocation1 [shape = 'u32[144,128]{1,0:T(1,128)}', space=vmem, size = 0x12000, scoped, tag = 'internal scratch']
  %s0 = inlined_call_operand.vmem [shape: f32[2,16,64], index: 0, kind: input, shape index: {}]
  %s1 = inlined_call_operand.hbm [shape: f32[3,64,128], index: 1, kind: input, shape index: {}]
  %s2 = inlined_call_operand.vmem [shape: f32[1,128], index: 2, kind: input, shape index: {}]
  %s3 = inlined_call_operand.vmem [shape: f32[3,128,128], index: 3, kind: input, shape index: {}]
  %s4 = inlined_call_operand.vmem [shape: f32[1,128], index: 4, kind: input, shape index: {}]
  %s5 = inlined_call_operand.vmem [shape: f32[32,128], index: 5, kind: output, shape index: {}]
  %s6 = sld [smem:[#allocation0]]
  $region57: #{double_conv.1} parent=0
    _
  %s8 = ssub.s32 1, %s6
  %s9 = scalar_select 0, %s8, %s6
  $region1: #{double_conv.1} parent=0
    #allocation2 [shape = 'u8[98304]{0}', space=vmem, size = 0x18000, scoped, tag = 'input window, operand 1, single buffered']
    #allocation3 [shape = 's32[2]{0}', space=sflag, size = 0x8, scoped, tag = 'scoped memory for double_conv.1']
    %10 = vsyncpa [#allocation3], 0
    loop: start=0, step=1, limit=4
    $region2: #{double_conv.1} parent=1 // loop_pre_header
      _
    $region3: #{double_conv.1} parent=1 // loop_header
      %s12 = sphi 0, %s16
      %p13 = scmp.ge.s32.totalorder %s12, 4
      %s22 = sphi 0, %s24
      %s25 = sphi 0, %s22
      %s26 = sphi 0, %s25
      %s42 = sphi 0, %s26
      %s46 = sphi 0, %s46
      %s48 = sphi 0, %s46
      %s49 = sphi 0, %s48
      %s63 = sphi 0, %s49
      %s67 = sphi 0, %s67
      %s69 = sphi 0, %s67
      %s70 = sphi 0, %s69
      %s84 = sphi 0, %s70
      %s88 = sphi 0, %s88
      %s90 = sphi 0, %s88
      %s91 = sphi 0, %s90
      %s105 = sphi 0, %s91
      %s109 = sphi 0, %s109
      %s111 = sphi 0, %s109
      %s112 = sphi 0, %s111
      %s126 = sphi 0, %s112
      %s132 = sphi 0, %s134
      %s135 = sphi 0, %s132
      %s136 = sphi 0, %s135
      %s152 = sphi 0, %s136
    $region4: #{double_conv.1} parent=1 // loop_header_branch
      %15 = sbr.rel (%p13) target = $region8
    $region5: #{double_conv.1} parent=1 // loop_body
      %s17 = ssub.s32 %s12, 1
      %s18 = ssub.s32 %s12, 2
      %s19 = sadd.s32 %s12, 1
      %s20 = ssub.s32 %s12, %s19
      %p21 = scmp.eq.s32.totalorder %s20, 0
      %s23 = sadd.s32 %s22, 1
      %s24 = scalar_select %p21, %s22, %s23
      %p27 = pneg %p21
      %p28 = scmp.eq.s32.totalorder %s12, 1
      %p29 = por %p27, %p28
      %p30 = scmp.ne.s32.totalorder %s22, %s25
      %p31 = scmp.eq.s32.totalorder %s12, 0
      %p32 = por %p30, %p31
      %p33 = scmp.ne.s32.totalorder %s22, %s25
      %p34 = scmp.eq.s32.totalorder %s17, 1
      %p35 = por %p33, %p34
      %p36 = scmp.ne.s32.totalorder %s25, %s26
      %p37 = scmp.eq.s32.totalorder %s17, 0
      %p38 = por %p36, %p37
      %p39 = scmp.ne.s32.totalorder %s25, %s26
      %p40 = scmp.eq.s32.totalorder %s18, 1
      %p41 = por %p39, %p40
      %p43 = scmp.ne.s32.totalorder %s26, %s42
      %p44 = scmp.eq.s32.totalorder %s18, 0
      %p45 = por %p43, %p44
      %s47 = sadd.s32 %s46, 1
      %p50 = scmp.eq.s32.totalorder %s12, 1
      %p51 = scmp.ne.s32.totalorder %s46, %s48
      %p52 = scmp.eq.s32.totalorder %s12, 0
      %p53 = por %p51, %p52
      %p54 = scmp.ne.s32.totalorder %s46, %s48
      %p55 = scmp.eq.s32.totalorder %s17, 1
      %p56 = por %p54, %p55
      %p57 = scmp.ne.s32.totalorder %s48, %s49
      %p58 = scmp.eq.s32.totalorder %s17, 0
      %p59 = por %p57, %p58
      %p60 = scmp.ne.s32.totalorder %s48, %s49
      %p61 = scmp.eq.s32.totalorder %s18, 1
      %p62 = por %p60, %p61
      %p64 = scmp.ne.s32.totalorder %s49, %s63
      %p65 = scmp.eq.s32.totalorder %s18, 0
      %p66 = por %p64, %p65
      %s68 = sadd.s32 %s67, 1
      %p71 = scmp.eq.s32.totalorder %s12, 1
      %p72 = scmp.ne.s32.totalorder %s67, %s69
      %p73 = scmp.eq.s32.totalorder %s12, 0
      %p74 = por %p72, %p73
      %p75 = scmp.ne.s32.totalorder %s67, %s69
      %p76 = scmp.eq.s32.totalorder %s17, 1
      %p77 = por %p75, %p76
      %p78 = scmp.ne.s32.totalorder %s69, %s70
      %p79 = scmp.eq.s32.totalorder %s17, 0
      %p80 = por %p78, %p79
      %p81 = scmp.ne.s32.totalorder %s69, %s70
      %p82 = scmp.eq.s32.totalorder %s18, 1
      %p83 = por %p81, %p82
      %p85 = scmp.ne.s32.totalorder %s70, %s84
      %p86 = scmp.eq.s32.totalorder %s18, 0
      %p87 = por %p85, %p86
      %s89 = sadd.s32 %s88, 1
      %p92 = scmp.eq.s32.totalorder %s12, 1
      %p93 = scmp.ne.s32.totalorder %s88, %s90
      %p94 = scmp.eq.s32.totalorder %s12, 0
      %p95 = por %p93, %p94
      %p96 = scmp.ne.s32.totalorder %s88, %s90
      %p97 = scmp.eq.s32.totalorder %s17, 1
      %p98 = por %p96, %p97
      %p99 = scmp.ne.s32.totalorder %s90, %s91
      %p100 = scmp.eq.s32.totalorder %s17, 0
      %p101 = por %p99, %p100
      %p102 = scmp.ne.s32.totalorder %s90, %s91
      %p103 = scmp.eq.s32.totalorder %s18, 1
      %p104 = por %p102, %p103
      %p106 = scmp.ne.s32.totalorder %s91, %s105
      %p107 = scmp.eq.s32.totalorder %s18, 0
      %p108 = por %p106, %p107
      %s110 = sadd.s32 %s109, 1
      %p113 = scmp.eq.s32.totalorder %s12, 1
      %p114 = scmp.ne.s32.totalorder %s109, %s111
      %p115 = scmp.eq.s32.totalorder %s12, 0
      %p116 = por %p114, %p115
      %p117 = scmp.ne.s32.totalorder %s109, %s111
      %p118 = scmp.eq.s32.totalorder %s17, 1
      %p119 = por %p117, %p118
      %p120 = scmp.ne.s32.totalorder %s111, %s112
      %p121 = scmp.eq.s32.totalorder %s17, 0
      %p122 = por %p120, %p121
      %p123 = scmp.ne.s32.totalorder %s111, %s112
      %p124 = scmp.eq.s32.totalorder %s18, 1
      %p125 = por %p123, %p124
      %p127 = scmp.ne.s32.totalorder %s112, %s126
      %p128 = scmp.eq.s32.totalorder %s18, 0
      %p129 = por %p127, %p128
      %s130 = ssub.s32 %s12, %s19
      %p131 = scmp.eq.s32.totalorder %s130, 0
      %s133 = sadd.s32 %s132, 1
      %s134 = scalar_select %p131, %s132, %s133
      %p137 = pneg %p131
      %p138 = scmp.eq.s32.totalorder %s12, 1
      %p139 = por %p137, %p138
      %p140 = scmp.ne.s32.totalorder %s132, %s135
      %p141 = scmp.eq.s32.totalorder %s12, 0
      %p142 = por %p140, %p141
      %p143 = scmp.ne.s32.totalorder %s132, %s135
      %p144 = scmp.eq.s32.totalorder %s17, 1
      %p145 = por %p143, %p144
      %p146 = scmp.ne.s32.totalorder %s135, %s136
      %p147 = scmp.eq.s32.totalorder %s17, 0
      %p148 = por %p146, %p147
      %p149 = scmp.ne.s32.totalorder %s135, %s136
      %p150 = scmp.eq.s32.totalorder %s18, 1
      %p151 = por %p149, %p150
      %p153 = scmp.ne.s32.totalorder %s136, %s152
      %p154 = scmp.eq.s32.totalorder %s18, 0
      %p155 = por %p153, %p154
      %p156 = scmp.le.s32.totalorder 1, %s12
      %p157 = scmp.lt.s32.totalorder %s12, 3
      %p158 = pnand %p156, %p157
      %p159 = pneg %p158
      // Predicated region
      $region9: #{double_conv.1} parent=5 // pred_check
        _
      $region10: #{double_conv.1} parent=5 // pred_check_branch
        %161 = sbr.rel (%p158) target = $region12
      $region11: #{double_conv.1} parent=5 // pred_region
        %s162 = ssub.s32 %s12, 1
        // Predicated region
        $region13: #{double_conv.1} parent=11 // pred_check
          %p163 = pneg %p59
        $region14: #{double_conv.1} parent=11 // pred_check_branch
          %165 = sbr.rel (%p163) target = $region16
        $region15: #{double_conv.1} parent=11 // pred_region
          %s167 = ssub.s32 3072, 3072
          %168 = vsyncadd [#allocation3], %s167
          %s169 = sshll.u32 [#allocation2], 4
          %s170 = int_to_ptr.vmem [resolvable:$true] %s169
          %175 = dma.hbm_to_vmem [thread:$0]  %s1, 3072, %s170, [#allocation3], 128, 128, 8
        $region16: #{double_conv.1} parent=11 // pred_fallthru
          _
        // Predicated region
        $region17: #{double_conv.1} parent=11 // pred_check
          %p176 = pneg %p80
        $region18: #{double_conv.1} parent=11 // pred_check_branch
          %178 = sbr.rel (%p176) target = $region20
        $region19: #{double_conv.1} parent=11 // pred_region
          _
        $region20: #{double_conv.1} parent=11 // pred_fallthru
          _
        // Predicated region
        $region21: #{double_conv.1} parent=11 // pred_check
          %p179 = pneg %p101
        $region22: #{double_conv.1} parent=11 // pred_check_branch
          %181 = sbr.rel (%p179) target = $region24
        $region23: #{double_conv.1} parent=11 // pred_region
          _
        $region24: #{double_conv.1} parent=11 // pred_fallthru
          _
        // Predicated region
        $region25: #{double_conv.1} parent=11 // pred_check
          %p182 = pneg %p122
        $region26: #{double_conv.1} parent=11 // pred_check_branch
          %184 = sbr.rel (%p182) target = $region28
        $region27: #{double_conv.1} parent=11 // pred_region
          _
        $region28: #{double_conv.1} parent=11 // pred_fallthru
          _
      $region12: #{double_conv.1} parent=5 // pred_fallthru
        _
      %p185 = scmp.lt.s32.totalorder %s12, 2
      // Predicated region
      $region29: #{double_conv.1} parent=5 // pred_check
        %p186 = pneg %p185
      $region30: #{double_conv.1} parent=5 // pred_check_branch
        %188 = sbr.rel (%p186) target = $region32
      $region31: #{double_conv.1} parent=5 // pred_region
        // Predicated region
        $region33: #{double_conv.1} parent=31 // pred_check
          %p189 = pneg %p32
        $region34: #{double_conv.1} parent=31 // pred_check_branch
          %191 = sbr.rel (%p189) target = $region36
        $region35: #{double_conv.1} parent=31 // pred_region
          %p192 = scmp.lt.s32.totalorder %s12, 1
          %s193 = scalar_select %p192, %s12, 1
          %s194 = smul.addr %s193, 2
          %s195 = smul.addr %s194, 8
          %s196 = scalar_lea.vmem %s0, %s195
        $region36: #{double_conv.1} parent=31 // pred_fallthru
          _
      $region32: #{double_conv.1} parent=5 // pred_fallthru
        _
      %p197 = scmp.le.s32.totalorder 1, %s12
      %p198 = scmp.lt.s32.totalorder %s12, 3
      %p199 = pnand %p197, %p198
      %p200 = pneg %p199
      // Predicated region
      $region37: #{double_conv.1} parent=5 // pred_check
        _
      $region38: #{double_conv.1} parent=5 // pred_check_branch
        %202 = sbr.rel (%p199) target = $region40
      $region39: #{double_conv.1} parent=5 // pred_region
        %s203 = ssub.s32 %s12, 1
        // Predicated region
        $region41: #{double_conv.1} parent=39 // pred_check
          %p204 = pneg %p59
        $region42: #{double_conv.1} parent=39 // pred_check_branch
          %206 = sbr.rel (%p204) target = $region44
        $region43: #{double_conv.1} parent=39 // pred_region
          %207 = dma.done [#allocation3], 3072
        $region44: #{double_conv.1} parent=39 // pred_fallthru
          _
        %p208 = scmp.lt.s32.totalorder %s17, 1
        %s209 = scalar_select %p208, %s17, 1
        %s210 = smul.addr %s209, 2
        %s211 = smul.addr %s210, 8
        %s212 = scalar_lea.vmem %s0, %s211
        %p213 = pneg %p38
        %p214 = pneg %p35
        %p215 = pneg %p59
        %p216 = pneg %p56
        %p217 = pneg %p80
        %p218 = pneg %p77
        %p219 = pneg %p101
        %p220 = pneg %p98
        %p221 = pneg %p122
        %p222 = pneg %p119
        %p223 = pneg %p148
        %p224 = pneg %p145
        %s225 = smul.u32 2, %s17
        %p226 = scmp.lt.s32.totalorder %s225, 3
        %s227 = scalar_select %p226, %s225, 3
        %s228 = smul.addr %s227, 8
        %s229 = scalar_lea.vmem %s5, %s228
        %p230 = scmp.lt.s32.totalorder %s17, 1
        %s231 = scalar_select %p230, %s17, 1
        %s232 = smul.addr %s231, 2
        %s233 = smul.addr %s232, 8
        %s234 = scalar_lea.vmem %s0, %s233
        %s235 = smul.u32 2, %s17
        %p236 = scmp.lt.s32.totalorder %s235, 3
        %s237 = scalar_select %p236, %s235, 3
        %s238 = smul.addr %s237, 8
        %s239 = scalar_lea.vmem %s5, %s238
        %s240 = smul.u32 2, %s17
        %v241 = vld [vmem:[%s234] sm:$0xff]
        %v242 = vld [vmem:[%s234 + $0x8] sm:$0xff]
        %v243 = vlaneseq
        %v244 = vshrl.u32 %v243, 7
        %v245 = vadd.s32 %v244, 8
        %v246 = vlaneseq
        %v247 = vand.u32 %v246, 127
        %v248 = vsub.s32 %v244, 1
        %v249 = vsub.s32 %v245, 1
        %vm250 = vcmp.eq.s32.totalorder %v247, %v248
        %vm251 = vcmp.eq.s32.totalorder %v247, %v249
        %v252 = vsel %vm250, 1, 0
        %v253 = vsel %vm251, 1, 0
        %v254 = vcvt.s32.f32 %v252
        %v255 = vcvt.s32.f32 %v253
        %v256 = vadd.s32 %v244, 1
        %v257 = vadd.s32 %v245, 1
        %vm258 = vcmp.eq.s32.totalorder %v247, %v256
        %vm259 = vcmp.eq.s32.totalorder %v247, %v257
        %v260 = vsel %vm258, 1, 0
        %v261 = vsel %vm259, 1, 0
        %v262 = vcvt.s32.f32 %v260
        %v263 = vcvt.s32.f32 %v261
        %vm264 = vcmask 130048
        %v266 = vsel %vm264, %v254, 0
        %v269 = vsel %vm264, %v255, 0
        %271 = vmatprep.subr.mxu0 0.0
        %272 = vmatpush1.msra.mxu0 %v241
        %273 = vmatprep.subr.mxu0 0.0
        %274 = vmatpush1.msra.mxu0 %v242
        %275 = vmatprep.subr.mxu0 0.0
        %276 = vmatpush1.msra.mxu0 0.0
        %277 = vmatprep.subr.mxu0 0.0
        %278 = vmatpush1.msra.mxu0 0.0
        %279 = vmatprep.subr.mxu0 0.0
        %280 = vmatpush1.msra.mxu0 0.0
        %281 = vmatprep.subr.mxu0 0.0
        %282 = vmatpush1.msra.mxu0 0.0
        %283 = vmatprep.subr.mxu0 0.0
        %284 = vmatpush1.msra.mxu0 0.0
        %285 = vmatprep.subr.mxu0 0.0
        %286 = vmatpush1.msra.mxu0 0.0
        %287 = vmatprep.subr.mxu0 0.0
        %288 = vmatpush1.msra.mxu0 0.0
        %289 = vmatprep.subr.mxu0 0.0
        %290 = vmatpush1.msra.mxu0 0.0
        %291 = vmatprep.subr.mxu0 0.0
        %292 = vmatpush1.msra.mxu0 0.0
        %293 = vmatprep.subr.mxu0 0.0
        %294 = vmatpush1.msra.mxu0 0.0
        %295 = vmatprep.subr.mxu0 0.0
        %296 = vmatpush1.msra.mxu0 0.0
        %297 = vmatprep.subr.mxu0 0.0
        %298 = vmatpush1.msra.mxu0 0.0
        %299 = vmatprep.subr.mxu0 0.0
        %300 = vmatpush1.msra.mxu0 0.0
        %301 = vmatprep.subr.mxu0 0.0
        %302 = vmatpush1.msra.mxu0 0.0
        %303 = vmatprep.subr.mxu0 0.0
        %304 = vmatpush1.msra.mxu0 0.0
        %305 = vmatprep.subr.mxu0 0.0
        %306 = vmatpush1.msra.mxu0 0.0
        %307 = vmatprep.subr.mxu0 0.0
        %308 = vmatpush1.msra.mxu0 0.0
        %309 = vmatprep.subr.mxu0 0.0
        %310 = vmatpush1.msra.mxu0 0.0
        %311 = vmatprep.subr.mxu0 0.0
        %312 = vmatpush1.msra.mxu0 0.0
        %313 = vmatprep.subr.mxu0 0.0
        %314 = vmatpush1.msra.mxu0 0.0
        %315 = vmatprep.subr.mxu0 0.0
        %316 = vmatpush1.msra.mxu0 0.0
        %317 = vmatprep.subr.mxu0 0.0
        %318 = vmatpush1.msra.mxu0 0.0
        %319 = vmatprep.subr.mxu0 0.0
        %320 = vmatpush1.msra.mxu0 0.0
        %321 = vmatprep.subr.mxu0 0.0
        %322 = vmatpush1.msra.mxu0 0.0
        %323 = vmatprep.subr.mxu0 0.0
        %324 = vmatpush1.msra.mxu0 0.0
        %325 = vmatprep.subr.mxu0 0.0
        %326 = vmatpush1.msra.mxu0 0.0
        %327 = vmatprep.subr.mxu0 0.0
        %328 = vmatpush1.msra.mxu0 0.0
        %329 = vmatprep.subr.mxu0 0.0
        %330 = vmatpush1.msra.mxu0 0.0
        %331 = vmatprep.subr.mxu0 0.0
        %332 = vmatpush1.msra.mxu0 0.0
        %333 = vmatprep.subr.mxu0 0.0
        %334 = vmatpush1.msra.mxu0 0.0
        %335 = vmatprep.mubr.f32.mxu0 0.0
        %336 = vmatmul.mubr.f32.gmra.mrb[0].mxu0 %v266
        %v337 = vpop.f32.mrb[0].mxu0
        %v338 = vadd.f32 0.0, %v337
        %v339 = vpop.f32.mrb[0].mxu0
        %340 = vmatprep.mubr.f32.mxu0 0.0
        %341 = vmatmul.mubr.f32.gmra.mrb[0].mxu0 %v269
        %v342 = vpop.f32.mrb[0].mxu0
        %v343 = vadd.f32 0.0, %v342
        %v344 = vpop.f32.mrb[0].mxu0
        %345 = vdwg.mxu0
        %v347 = vsel %vm264, %v262, 0
        %v350 = vsel %vm264, %v263, 0
        %352 = vmatprep.subr.mxu0 0.0
        %353 = vmatpush1.msra.mxu0 %v241
        %354 = vmatprep.subr.mxu0 0.0
        %355 = vmatpush1.msra.mxu0 %v242
        %356 = vmatprep.subr.mxu0 0.0
        %357 = vmatpush1.msra.mxu0 0.0
        %358 = vmatprep.subr.mxu0 0.0
        %359 = vmatpush1.msra.mxu0 0.0
        %360 = vmatprep.subr.mxu0 0.0
        %361 = vmatpush1.msra.mxu0 0.0
        %362 = vmatprep.subr.mxu0 0.0
        %363 = vmatpush1.msra.mxu0 0.0
        %364 = vmatprep.subr.mxu0 0.0
        %365 = vmatpush1.msra.mxu0 0.0
        %366 = vmatprep.subr.mxu0 0.0
        %367 = vmatpush1.msra.mxu0 0.0
        %368 = vmatprep.subr.mxu0 0.0
        %369 = vmatpush1.msra.mxu0 0.0
        %370 = vmatprep.subr.mxu0 0.0
        %371 = vmatpush1.msra.mxu0 0.0
        %372 = vmatprep.subr.mxu0 0.0
        %373 = vmatpush1.msra.mxu0 0.0
        %374 = vmatprep.subr.mxu0 0.0
        %375 = vmatpush1.msra.mxu0 0.0
        %376 = vmatprep.subr.mxu0 0.0
        %377 = vmatpush1.msra.mxu0 0.0
        %378 = vmatprep.subr.mxu0 0.0
        %379 = vmatpush1.msra.mxu0 0.0
        %380 = vmatprep.subr.mxu0 0.0
        %381 = vmatpush1.msra.mxu0 0.0
        %382 = vmatprep.subr.mxu0 0.0
        %383 = vmatpush1.msra.mxu0 0.0
        %384 = vmatprep.subr.mxu0 0.0
        %385 = vmatpush1.msra.mxu0 0.0
        %386 = vmatprep.subr.mxu0 0.0
        %387 = vmatpush1.msra.mxu0 0.0
        %388 = vmatprep.subr.mxu0 0.0
        %389 = vmatpush1.msra.mxu0 0.0
        %390 = vmatprep.subr.mxu0 0.0
        %391 = vmatpush1.msra.mxu0 0.0
        %392 = vmatprep.subr.mxu0 0.0
        %393 = vmatpush1.msra.mxu0 0.0
        %394 = vmatprep.subr.mxu0 0.0
        %395 = vmatpush1.msra.mxu0 0.0
        %396 = vmatprep.subr.mxu0 0.0
        %397 = vmatpush1.msra.mxu0 0.0
        %398 = vmatprep.subr.mxu0 0.0
        %399 = vmatpush1.msra.mxu0 0.0
        %400 = vmatprep.subr.mxu0 0.0
        %401 = vmatpush1.msra.mxu0 0.0
        %402 = vmatprep.subr.mxu0 0.0
        %403 = vmatpush1.msra.mxu0 0.0
        %404 = vmatprep.subr.mxu0 0.0
        %405 = vmatpush1.msra.mxu0 0.0
        %406 = vmatprep.subr.mxu0 0.0
        %407 = vmatpush1.msra.mxu0 0.0
        %408 = vmatprep.subr.mxu0 0.0
        %409 = vmatpush1.msra.mxu0 0.0
        %410 = vmatprep.subr.mxu0 0.0
        %411 = vmatpush1.msra.mxu0 0.0
        %412 = vmatprep.subr.mxu0 0.0
        %413 = vmatpush1.msra.mxu0 0.0
        %414 = vmatprep.subr.mxu0 0.0
        %415 = vmatpush1.msra.mxu0 0.0
        %416 = vmatprep.mubr.f32.mxu0 0.0
        %417 = vmatmul.mubr.f32.gmra.mrb[0].mxu0 %v347
        %v418 = vpop.f32.mrb[0].mxu0
        %v419 = vadd.f32 0.0, %v418
        %v420 = vpop.f32.mrb[0].mxu0
        %421 = vmatprep.mubr.f32.mxu0 0.0
        %422 = vmatmul.mubr.f32.gmra.mrb[0].mxu0 %v350
        %v423 = vpop.f32.mrb[0].mxu0
        %v424 = vadd.f32 0.0, %v423
        %v425 = vpop.f32.mrb[0].mxu0
        %426 = vdwg.mxu0
        %v427 = vld [vmem:[#allocation2] sm:$0xff]
        %v428 = vld [vmem:[#allocation2 + $0x8] sm:$0xff]
        %v429 = vld [vmem:[#allocation2 + $0x10] sm:$0xff]
        %v430 = vld [vmem:[#allocation2 + $0x18] sm:$0xff]
        %v431 = vld [vmem:[#allocation2 + $0x20] sm:$0xff]
        %v432 = vld [vmem:[#allocation2 + $0x28] sm:$0xff]
        %v433 = vld [vmem:[#allocation2 + $0x30] sm:$0xff]
        %v434 = vld [vmem:[#allocation2 + $0x38] sm:$0xff]
        %s435 = scalar_lea.vmem [#allocation2], 64
        %v436 = vld [vmem:[%s435] sm:$0xff]
        %v437 = vld [vmem:[%s435 + $0x8] sm:$0xff]
        %v438 = vld [vmem:[%s435 + $0x10] sm:$0xff]
        %v439 = vld [vmem:[%s435 + $0x18] sm:$0xff]
        %v440 = vld [vmem:[%s435 + $0x20] sm:$0xff]
        %v441 = vld [vmem:[%s435 + $0x28] sm:$0xff]
        %v442 = vld [vmem:[%s435 + $0x30] sm:$0xff]
        %v443 = vld [vmem:[%s435 + $0x38] sm:$0xff]
        %vm444 = vcmask 523264
        %v446 = vsel %vm444, %v241, 0
        %v449 = vsel %vm444, %v242, 0
        %451 = vmatprep.subr.mxu0 0.0
        %452 = vmatpush1.msra.mxu0 %v436
        %453 = vmatprep.subr.mxu0 0.0
        %454 = vmatpush1.msra.mxu0 %v437
        %455 = vmatprep.subr.mxu0 0.0
        %456 = vmatpush1.msra.mxu0 %v438
        %457 = vmatprep.subr.mxu0 0.0
        %458 = vmatpush1.msra.mxu0 %v439
        %459 = vmatprep.subr.mxu0 0.0
        %460 = vmatpush1.msra.mxu0 %v440
        %461 = vmatprep.subr.mxu0 0.0
        %462 = vmatpush1.msra.mxu0 %v441
        %463 = vmatprep.subr.mxu0 0.0
        %464 = vmatpush1.msra.mxu0 %v442
        %465 = vmatprep.subr.mxu0 0.0
        %466 = vmatpush1.msra.mxu0 %v443
        %467 = vmatprep.subr.mxu0 0.0
        %468 = vmatpush1.msra.mxu0 0.0
        %469 = vmatprep.subr.mxu0 0.0
        %470 = vmatpush1.msra.mxu0 0.0
        %471 = vmatprep.subr.mxu0 0.0
        %472 = vmatpush1.msra.mxu0 0.0
        %473 = vmatprep.subr.mxu0 0.0
        %474 = vmatpush1.msra.mxu0 0.0
        %475 = vmatprep.subr.mxu0 0.0
        %476 = vmatpush1.msra.mxu0 0.0
        %477 = vmatprep.subr.mxu0 0.0
        %478 = vmatpush1.msra.mxu0 0.0
        %479 = vmatprep.subr.mxu0 0.0
        %480 = vmatpush1.msra.mxu0 0.0
        %481 = vmatprep.subr.mxu0 0.0
        %482 = vmatpush1.msra.mxu0 0.0
        %483 = vmatprep.subr.mxu0 0.0
        %484 = vmatpush1.msra.mxu0 0.0
        %485 = vmatprep.subr.mxu0 0.0
        %486 = vmatpush1.msra.mxu0 0.0
        %487 = vmatprep.subr.mxu0 0.0
        %488 = vmatpush1.msra.mxu0 0.0
        %489 = vmatprep.subr.mxu0 0.0
        %490 = vmatpush1.msra.mxu0 0.0
        %491 = vmatprep.subr.mxu0 0.0
        %492 = vmatpush1.msra.mxu0 0.0
        %493 = vmatprep.subr.mxu0 0.0
        %494 = vmatpush1.msra.mxu0 0.0
        %495 = vmatprep.subr.mxu0 0.0
        %496 = vmatpush1.msra.mxu0 0.0
        %497 = vmatprep.subr.mxu0 0.0
        %498 = vmatpush1.msra.mxu0 0.0
        %499 = vmatprep.subr.mxu0 0.0
        %500 = vmatpush1.msra.mxu0 0.0
        %501 = vmatprep.subr.mxu0 0.0
        %502 = vmatpush1.msra.mxu0 0.0
        %503 = vmatprep.subr.mxu0 0.0
        %504 = vmatpush1.msra.mxu0 0.0
        %505 = vmatprep.subr.mxu0 0.0
        %506 = vmatpush1.msra.mxu0 0.0
        %507 = vmatprep.subr.mxu0 0.0
        %508 = vmatpush1.msra.mxu0 0.0
        %509 = vmatprep.subr.mxu0 0.0
        %510 = vmatpush1.msra.mxu0 0.0
        %511 = vmatprep.subr.mxu0 0.0
        %512 = vmatpush1.msra.mxu0 0.0
        %513 = vmatprep.subr.mxu0 0.0
        %514 = vmatpush1.msra.mxu0 0.0
        %515 = vmatprep.mubr.f32.mxu0 0.0
        %516 = vmatmul.mubr.f32.gmra.mrb[0].mxu0 %v446
        %v517 = vpop.f32.mrb[0].mxu0
        %v518 = vadd.f32 0.0, %v517
        %v519 = vpop.f32.mrb[0].mxu0
        %520 = vmatprep.mubr.f32.mxu0 0.0
        %521 = vmatmul.mubr.f32.gmra.mrb[0].mxu0 %v449
        %v522 = vpop.f32.mrb[0].mxu0
        %v523 = vadd.f32 0.0, %v522
        %v524 = vpop.f32.mrb[0].mxu0
        %525 = vdwg.mxu0
        %v527 = vsel %vm444, %v338, 0
        %v530 = vsel %vm444, %v343, 0
        %532 = vmatprep.subr.mxu0 0.0
        %533 = vmatpush1.msra.mxu0 %v427
        %534 = vmatprep.subr.mxu0 0.0
        %535 = vmatpush1.msra.mxu0 %v428
        %536 = vmatprep.subr.mxu0 0.0
        %537 = vmatpush1.msra.mxu0 %v429
        %538 = vmatprep.subr.mxu0 0.0
        %539 = vmatpush1.msra.mxu0 %v430
        %540 = vmatprep.subr.mxu0 0.0
        %541 = vmatpush1.msra.mxu0 %v431
        %542 = vmatprep.subr.mxu0 0.0
        %543 = vmatpush1.msra.mxu0 %v432
        %544 = vmatprep.subr.mxu0 0.0
        %545 = vmatpush1.msra.mxu0 %v433
        %546 = vmatprep.subr.mxu0 0.0
        %547 = vmatpush1.msra.mxu0 %v434
        %548 = vmatprep.subr.mxu0 0.0
        %549 = vmatpush1.msra.mxu0 0.0
        %550 = vmatprep.subr.mxu0 0.0
        %551 = vmatpush1.msra.mxu0 0.0
        %552 = vmatprep.subr.mxu0 0.0
        %553 = vmatpush1.msra.mxu0 0.0
        %554 = vmatprep.subr.mxu0 0.0
        %555 = vmatpush1.msra.mxu0 0.0
        %556 = vmatprep.subr.mxu0 0.0
        %557 = vmatpush1.msra.mxu0 0.0
        %558 = vmatprep.subr.mxu0 0.0
        %559 = vmatpush1.msra.mxu0 0.0
        %560 = vmatprep.subr.mxu0 0.0
        %561 = vmatpush1.msra.mxu0 0.0
        %562 = vmatprep.subr.mxu0 0.0
        %563 = vmatpush1.msra.mxu0 0.0
        %564 = vmatprep.subr.mxu0 0.0
        %565 = vmatpush1.msra.mxu0 0.0
        %566 = vmatprep.subr.mxu0 0.0
        %567 = vmatpush1.msra.mxu0 0.0
        %568 = vmatprep.subr.mxu0 0.0
        %569 = vmatpush1.msra.mxu0 0.0
        %570 = vmatprep.subr.mxu0 0.0
        %571 = vmatpush1.msra.mxu0 0.0
        %572 = vmatprep.subr.mxu0 0.0
        %573 = vmatpush1.msra.mxu0 0.0
        %574 = vmatprep.subr.mxu0 0.0
        %575 = vmatpush1.msra.mxu0 0.0
        %576 = vmatprep.subr.mxu0 0.0
        %577 = vmatpush1.msra.mxu0 0.0
        %578 = vmatprep.subr.mxu0 0.0
        %579 = vmatpush1.msra.mxu0 0.0
        %580 = vmatprep.subr.mxu0 0.0
        %581 = vmatpush1.msra.mxu0 0.0
        %582 = vmatprep.subr.mxu0 0.0
        %583 = vmatpush1.msra.mxu0 0.0
        %584 = vmatprep.subr.mxu0 0.0
        %585 = vmatpush1.msra.mxu0 0.0
        %586 = vmatprep.subr.mxu0 0.0
        %587 = vmatpush1.msra.mxu0 0.0
        %588 = vmatprep.subr.mxu0 0.0
        %589 = vmatpush1.msra.mxu0 0.0
        %590 = vmatprep.subr.mxu0 0.0
        %591 = vmatpush1.msra.mxu0 0.0
        %592 = vmatprep.subr.mxu0 0.0
        %593 = vmatpush1.msra.mxu0 0.0
        %594 = vmatprep.subr.mxu0 0.0
        %595 = vmatpush1.msra.mxu0 0.0
        %596 = vmatprep.mubr.f32.mxu0 0.0
        %597 = vmatmul.mubr.f32.gmra.mrb[0].mxu0 %v527
        %v598 = vpop.f32.mrb[0].mxu0
        %v599 = vadd.f32 %v518, %v598
        %v600 = vpop.f32.mrb[0].mxu0
        %601 = vmatprep.mubr.f32.mxu0 0.0
        %602 = vmatmul.mubr.f32.gmra.mrb[0].mxu0 %v530
        %v603 = vpop.f32.mrb[0].mxu0
        %v604 = vadd.f32 %v523, %v603
        %v605 = vpop.f32.mrb[0].mxu0
        %606 = vdwg.mxu0
        %s607 = scalar_lea.vmem [#allocation2], 128
        %v608 = vld [vmem:[%s607] sm:$0xff]
        %v609 = vld [vmem:[%s607 + $0x8] sm:$0xff]
        %v610 = vld [vmem:[%s607 + $0x10] sm:$0xff]
        %v611 = vld [vmem:[%s607 + $0x18] sm:$0xff]
        %v612 = vld [vmem:[%s607 + $0x20] sm:$0xff]
        %v613 = vld [vmem:[%s607 + $0x28] sm:$0xff]
        %v614 = vld [vmem:[%s607 + $0x30] sm:$0xff]
        %v615 = vld [vmem:[%s607 + $0x38] sm:$0xff]
        %v617 = vsel %vm444, %v419, 0
        %v620 = vsel %vm444, %v424, 0
        %622 = vmatprep.subr.mxu0 0.0
        %623 = vmatpush1.msra.mxu0 %v608
        %624 = vmatprep.subr.mxu0 0.0
        %625 = vmatpush1.msra.mxu0 %v609
        %626 = vmatprep.subr.mxu0 0.0
        %627 = vmatpush1.msra.mxu0 %v610
        %628 = vmatprep.subr.mxu0 0.0
        %629 = vmatpush1.msra.mxu0 %v611
        %630 = vmatprep.subr.mxu0 0.0
        %631 = vmatpush1.msra.mxu0 %v612
        %632 = vmatprep.subr.mxu0 0.0
        %633 = vmatpush1.msra.mxu0 %v613
        %634 = vmatprep.subr.mxu0 0.0
        %635 = vmatpush1.msra.mxu0 %v614
        %636 = vmatprep.subr.mxu0 0.0
        %637 = vmatpush1.msra.mxu0 %v615
        %638 = vmatprep.subr.mxu0 0.0
        %639 = vmatpush1.msra.mxu0 0.0
        %640 = vmatprep.subr.mxu0 0.0
        %641 = vmatpush1.msra.mxu0 0.0
        %642 = vmatprep.subr.mxu0 0.0
        %643 = vmatpush1.msra.mxu0 0.0
        %644 = vmatprep.subr.mxu0 0.0
        %645 = vmatpush1.msra.mxu0 0.0
        %646 = vmatprep.subr.mxu0 0.0
        %647 = vmatpush1.msra.mxu0 0.0
        %648 = vmatprep.subr.mxu0 0.0
        %649 = vmatpush1.msra.mxu0 0.0
        %650 = vmatprep.subr.mxu0 0.0
        %651 = vmatpush1.msra.mxu0 0.0
        %652 = vmatprep.subr.mxu0 0.0
        %653 = vmatpush1.msra.mxu0 0.0
        %654 = vmatprep.subr.mxu0 0.0
        %655 = vmatpush1.msra.mxu0 0.0
        %656 = vmatprep.subr.mxu0 0.0
        %657 = vmatpush1.msra.mxu0 0.0
        %658 = vmatprep.subr.mxu0 0.0
        %659 = vmatpush1.msra.mxu0 0.0
        %660 = vmatprep.subr.mxu0 0.0
        %661 = vmatpush1.msra.mxu0 0.0
        %662 = vmatprep.subr.mxu0 0.0
        %663 = vmatpush1.msra.mxu0 0.0
        %664 = vmatprep.subr.mxu0 0.0
        %665 = vmatpush1.msra.mxu0 0.0
        %666 = vmatprep.subr.mxu0 0.0
        %667 = vmatpush1.msra.mxu0 0.0
        %668 = vmatprep.subr.mxu0 0.0
        %669 = vmatpush1.msra.mxu0 0.0
        %670 = vmatprep.subr.mxu0 0.0
        %671 = vmatpush1.msra.mxu0 0.0
        %672 = vmatprep.subr.mxu0 0.0
        %673 = vmatpush1.msra.mxu0 0.0
        %674 = vmatprep.subr.mxu0 0.0
        %675 = vmatpush1.msra.mxu0 0.0
        %676 = vmatprep.subr.mxu0 0.0
        %677 = vmatpush1.msra.mxu0 0.0
        %678 = vmatprep.subr.mxu0 0.0
        %679 = vmatpush1.msra.mxu0 0.0
        %680 = vmatprep.subr.mxu0 0.0
        %681 = vmatpush1.msra.mxu0 0.0
        %682 = vmatprep.subr.mxu0 0.0
        %683 = vmatpush1.msra.mxu0 0.0
        %684 = vmatprep.subr.mxu0 0.0
        %685 = vmatpush1.msra.mxu0 0.0
        %686 = vmatprep.mubr.f32.mxu0 0.0
        %687 = vmatmul.mubr.f32.gmra.mrb[0].mxu0 %v617
        %v688 = vpop.f32.mrb[0].mxu0
        %v689 = vadd.f32 0.0, %v688
        %v690 = vpop.f32.mrb[0].mxu0
        %691 = vmatprep.mubr.f32.mxu0 0.0
        %692 = vmatmul.mubr.f32.gmra.mrb[0].mxu0 %v620
        %v693 = vpop.f32.mrb[0].mxu0
        %v694 = vadd.f32 0.0, %v693
        %v695 = vpop.f32.mrb[0].mxu0
        %696 = vdwg.mxu0
        %v697 = vadd.f32 %v599, %v689
        %v698 = vadd.f32 %v604, %v694
        %v699 = vld [vmem:[%s2] sm:$0x1]
        %v701 = vlaneseq
        %v702 = vshrl.u32 %v701, 7
        %v703 = vsub.s32 0, %v702
        %v704 = vrot.slane %v699, %v703
        %v706 = vadd.f32 %v697, %v704
        %v707 = vadd.f32 %v698, %v704
        %v708 = vmax.f32 %v706, 0.0
        %v709 = vmax.f32 %v707, 0.0
        %710 = vmatprep.subr.mxu0 0.0
        %711 = vmatpush1.msra.mxu0 %v708
        %712 = vmatprep.subr.mxu0 0.0
        %713 = vmatpush1.msra.mxu0 %v709
        %714 = vmatprep.subr.mxu0 0.0
        %715 = vmatpush1.msra.mxu0 0.0
        %716 = vmatprep.subr.mxu0 0.0
        %717 = vmatpush1.msra.mxu0 0.0
        %718 = vmatprep.subr.mxu0 0.0
        %719 = vmatpush1.msra.mxu0 0.0
        %720 = vmatprep.subr.mxu0 0.0
        %721 = vmatpush1.msra.mxu0 0.0
        %722 = vmatprep.subr.mxu0 0.0
        %723 = vmatpush1.msra.mxu0 0.0
        %724 = vmatprep.subr.mxu0 0.0
        %725 = vmatpush1.msra.mxu0 0.0
        %726 = vmatprep.subr.mxu0 0.0
        %727 = vmatpush1.msra.mxu0 0.0
        %728 = vmatprep.subr.mxu0 0.0
        %729 = vmatpush1.msra.mxu0 0.0
        %730 = vmatprep.subr.mxu0 0.0
        %731 = vmatpush1.msra.mxu0 0.0
        %732 = vmatprep.subr.mxu0 0.0
        %733 = vmatpush1.msra.mxu0 0.0
        %734 = vmatprep.subr.mxu0 0.0
        %735 = vmatpush1.msra.mxu0 0.0
        %736 = vmatprep.subr.mxu0 0.0
        %737 = vmatpush1.msra.mxu0 0.0
        %738 = vmatprep.subr.mxu0 0.0
        %739 = vmatpush1.msra.mxu0 0.0
        %740 = vmatprep.subr.mxu0 0.0
        %741 = vmatpush1.msra.mxu0 0.0
        %742 = vmatprep.subr.mxu0 0.0
        %743 = vmatpush1.msra.mxu0 0.0
        %744 = vmatprep.subr.mxu0 0.0
        %745 = vmatpush1.msra.mxu0 0.0
        %746 = vmatprep.subr.mxu0 0.0
        %747 = vmatpush1.msra.mxu0 0.0
        %748 = vmatprep.subr.mxu0 0.0
        %749 = vmatpush1.msra.mxu0 0.0
        %750 = vmatprep.subr.mxu0 0.0
        %751 = vmatpush1.msra.mxu0 0.0
        %752 = vmatprep.subr.mxu0 0.0
        %753 = vmatpush1.msra.mxu0 0.0
        %754 = vmatprep.subr.mxu0 0.0
        %755 = vmatpush1.msra.mxu0 0.0
        %756 = vmatprep.subr.mxu0 0.0
        %757 = vmatpush1.msra.mxu0 0.0
        %758 = vmatprep.subr.mxu0 0.0
        %759 = vmatpush1.msra.mxu0 0.0
        %760 = vmatprep.subr.mxu0 0.0
        %761 = vmatpush1.msra.mxu0 0.0
        %762 = vmatprep.subr.mxu0 0.0
        %763 = vmatpush1.msra.mxu0 0.0
        %764 = vmatprep.subr.mxu0 0.0
        %765 = vmatpush1.msra.mxu0 0.0
        %766 = vmatprep.subr.mxu0 0.0
        %767 = vmatpush1.msra.mxu0 0.0
        %768 = vmatprep.subr.mxu0 0.0
        %769 = vmatpush1.msra.mxu0 0.0
        %770 = vmatprep.subr.mxu0 0.0
        %771 = vmatpush1.msra.mxu0 0.0
        %772 = vmatprep.subr.mxu0 0.0
        %773 = vmatpush1.msra.mxu0 0.0
        %774 = vmatprep.mubr.f32.mxu0 0.0
        %775 = vmatmul.mubr.f32.gmra.mrb[0].mxu0 %v266
        %v776 = vpop.f32.mrb[0].mxu0
        %v777 = vadd.f32 0.0, %v776
        %v778 = vpop.f32.mrb[0].mxu0
        %779 = vmatprep.mubr.f32.mxu0 0.0
        %780 = vmatmul.mubr.f32.gmra.mrb[0].mxu0 %v269
        %v781 = vpop.f32.mrb[0].mxu0
        %v782 = vadd.f32 0.0, %v781
        %v783 = vpop.f32.mrb[0].mxu0
        %784 = vdwg.mxu0
        %785 = vmatprep.subr.mxu0 0.0
        %786 = vmatpush1.msra.mxu0 %v708
        %787 = vmatprep.subr.mxu0 0.0
        %788 = vmatpush1.msra.mxu0 %v709
        %789 = vmatprep.subr.mxu0 0.0
        %790 = vmatpush1.msra.mxu0 0.0
        %791 = vmatprep.subr.mxu0 0.0
        %792 = vmatpush1.msra.mxu0 0.0
        %793 = vmatprep.subr.mxu0 0.0
        %794 = vmatpush1.msra.mxu0 0.0
        %795 = vmatprep.subr.mxu0 0.0
        %796 = vmatpush1.msra.mxu0 0.0
        %797 = vmatprep.subr.mxu0 0.0
        %798 = vmatpush1.msra.mxu0 0.0
        %799 = vmatprep.subr.mxu0 0.0
        %800 = vmatpush1.msra.mxu0 0.0
        %801 = vmatprep.subr.mxu0 0.0
        %802 = vmatpush1.msra.mxu0 0.0
        %803 = vmatprep.subr.mxu0 0.0
        %804 = vmatpush1.msra.mxu0 0.0
        %805 = vmatprep.subr.mxu0 0.0
        %806 = vmatpush1.msra.mxu0 0.0
        %807 = vmatprep.subr.mxu0 0.0
        %808 = vmatpush1.msra.mxu0 0.0
        %809 = vmatprep.subr.mxu0 0.0
        %810 = vmatpush1.msra.mxu0 0.0
        %811 = vmatprep.subr.mxu0 0.0
        %812 = vmatpush1.msra.mxu0 0.0
        %813 = vmatprep.subr.mxu0 0.0
        %814 = vmatpush1.msra.mxu0 0.0
        %815 = vmatprep.subr.mxu0 0.0
        %816 = vmatpush1.msra.mxu0 0.0
        %817 = vmatprep.subr.mxu0 0.0
        %818 = vmatpush1.msra.mxu0 0.0
        %819 = vmatprep.subr.mxu0 0.0
        %820 = vmatpush1.msra.mxu0 0.0
        %821 = vmatprep.subr.mxu0 0.0
        %822 = vmatpush1.msra.mxu0 0.0
        %823 = vmatprep.subr.mxu0 0.0
        %824 = vmatpush1.msra.mxu0 0.0
        %825 = vmatprep.subr.mxu0 0.0
        %826 = vmatpush1.msra.mxu0 0.0
        %827 = vmatprep.subr.mxu0 0.0
        %828 = vmatpush1.msra.mxu0 0.0
        %829 = vmatprep.subr.mxu0 0.0
        %830 = vmatpush1.msra.mxu0 0.0
        %831 = vmatprep.subr.mxu0 0.0
        %832 = vmatpush1.msra.mxu0 0.0
        %833 = vmatprep.subr.mxu0 0.0
        %834 = vmatpush1.msra.mxu0 0.0
        %835 = vmatprep.subr.mxu0 0.0
        %836 = vmatpush1.msra.mxu0 0.0
        %837 = vmatprep.subr.mxu0 0.0
        %838 = vmatpush1.msra.mxu0 0.0
        %839 = vmatprep.subr.mxu0 0.0
        %840 = vmatpush1.msra.mxu0 0.0
        %841 = vmatprep.subr.mxu0 0.0
        %842 = vmatpush1.msra.mxu0 0.0
        %843 = vmatprep.subr.mxu0 0.0
        %844 = vmatpush1.msra.mxu0 0.0
        %845 = vmatprep.subr.mxu0 0.0
        %846 = vmatpush1.msra.mxu0 0.0
        %847 = vmatprep.subr.mxu0 0.0
        %848 = vmatpush1.msra.mxu0 0.0
        %849 = vmatprep.mubr.f32.mxu0 0.0
        %850 = vmatmul.mubr.f32.gmra.mrb[0].mxu0 %v347
        %v851 = vpop.f32.mrb[0].mxu0
        %v852 = vadd.f32 0.0, %v851
        %v853 = vpop.f32.mrb[0].mxu0
        %854 = vmatprep.mubr.f32.mxu0 0.0
        %855 = vmatmul.mubr.f32.gmra.mrb[0].mxu0 %v350
        %v856 = vpop.f32.mrb[0].mxu0
        %v857 = vadd.f32 0.0, %v856
        %v858 = vpop.f32.mrb[0].mxu0
        %859 = vdwg.mxu0
        %v860 = vld [vmem:[%s3] sm:$0xff]
        %v861 = vld [vmem:[%s3 + $0x8] sm:$0xff]
        %v862 = vld [vmem:[%s3 + $0x10] sm:$0xff]
        %v863 = vld [vmem:[%s3 + $0x18] sm:$0xff]
        %v864 = vld [vmem:[%s3 + $0x20] sm:$0xff]
        %v865 = vld [vmem:[%s3 + $0x28] sm:$0xff]
        %v866 = vld [vmem:[%s3 + $0x30] sm:$0xff]
        %v867 = vld [vmem:[%s3 + $0x38] sm:$0xff]
        %v868 = vld [vmem:[%s3 + $0x40] sm:$0xff]
        %v869 = vld [vmem:[%s3 + $0x48] sm:$0xff]
        %v870 = vld [vmem:[%s3 + $0x50] sm:$0xff]
        %v871 = vld [vmem:[%s3 + $0x58] sm:$0xff]
        %v872 = vld [vmem:[%s3 + $0x60] sm:$0xff]
        %v873 = vld [vmem:[%s3 + $0x68] sm:$0xff]
        %v874 = vld [vmem:[%s3 + $0x70] sm:$0xff]
        %v875 = vld [vmem:[%s3 + $0x78] sm:$0xff]
        %s876 = scalar_lea.vmem %s3, 128
        %v877 = vld [vmem:[%s876] sm:$0xff]
        %v878 = vld [vmem:[%s876 + $0x8] sm:$0xff]
        %v879 = vld [vmem:[%s876 + $0x10] sm:$0xff]
        %v880 = vld [vmem:[%s876 + $0x18] sm:$0xff]
        %v881 = vld [vmem:[%s876 + $0x20] sm:$0xff]
        %v882 = vld [vmem:[%s876 + $0x28] sm:$0xff]
        %v883 = vld [vmem:[%s876 + $0x30] sm:$0xff]
        %v884 = vld [vmem:[%s876 + $0x38] sm:$0xff]
        %v885 = vld [vmem:[%s876 + $0x40] sm:$0xff]
        %v886 = vld [vmem:[%s876 + $0x48] sm:$0xff]
        %v887 = vld [vmem:[%s876 + $0x50] sm:$0xff]
        %v888 = vld [vmem:[%s876 + $0x58] sm:$0xff]
        %v889 = vld [vmem:[%s876 + $0x60] sm:$0xff]
        %v890 = vld [vmem:[%s876 + $0x68] sm:$0xff]
        %v891 = vld [vmem:[%s876 + $0x70] sm:$0xff]
        %v892 = vld [vmem:[%s876 + $0x78] sm:$0xff]
        %893 = vmatprep.subr.mxu0 0.0
        %894 = vmatpush1.msra.mxu0 %v877
        %895 = vmatprep.subr.mxu0 0.0
        %896 = vmatpush1.msra.mxu0 %v878
        %897 = vmatprep.subr.mxu0 0.0
        %898 = vmatpush1.msra.mxu0 %v879
        %899 = vmatprep.subr.mxu0 0.0
        %900 = vmatpush1.msra.mxu0 %v880
        %901 = vmatprep.subr.mxu0 0.0
        %902 = vmatpush1.msra.mxu0 %v881
        %903 = vmatprep.subr.mxu0 0.0
        %904 = vmatpush1.msra.mxu0 %v882
        %905 = vmatprep.subr.mxu0 0.0
        %906 = vmatpush1.msra.mxu0 %v883
        %907 = vmatprep.subr.mxu0 0.0
        %908 = vmatpush1.msra.mxu0 %v884
        %909 = vmatprep.subr.mxu0 0.0
        %910 = vmatpush1.msra.mxu0 %v885
        %911 = vmatprep.subr.mxu0 0.0
        %912 = vmatpush1.msra.mxu0 %v886
        %913 = vmatprep.subr.mxu0 0.0
        %914 = vmatpush1.msra.mxu0 %v887
        %915 = vmatprep.subr.mxu0 0.0
        %916 = vmatpush1.msra.mxu0 %v888
        %917 = vmatprep.subr.mxu0 0.0
        %918 = vmatpush1.msra.mxu0 %v889
        %919 = vmatprep.subr.mxu0 0.0
        %920 = vmatpush1.msra.mxu0 %v890
        %921 = vmatprep.subr.mxu0 0.0
        %922 = vmatpush1.msra.mxu0 %v891
        %923 = vmatprep.subr.mxu0 0.0
        %924 = vmatpush1.msra.mxu0 %v892
        %925 = vmatprep.subr.mxu0 0.0
        %926 = vmatpush1.msra.mxu0 0.0
        %927 = vmatprep.subr.mxu0 0.0
        %928 = vmatpush1.msra.mxu0 0.0
        %929 = vmatprep.subr.mxu0 0.0
        %930 = vmatpush1.msra.mxu0 0.0
        %931 = vmatprep.subr.mxu0 0.0
        %932 = vmatpush1.msra.mxu0 0.0
        %933 = vmatprep.subr.mxu0 0.0
        %934 = vmatpush1.msra.mxu0 0.0
        %935 = vmatprep.subr.mxu0 0.0
        %936 = vmatpush1.msra.mxu0 0.0
        %937 = vmatprep.subr.mxu0 0.0
        %938 = vmatpush1.msra.mxu0 0.0
        %939 = vmatprep.subr.mxu0 0.0
        %940 = vmatpush1.msra.mxu0 0.0
        %941 = vmatprep.subr.mxu0 0.0
        %942 = vmatpush1.msra.mxu0 0.0
        %943 = vmatprep.subr.mxu0 0.0
        %944 = vmatpush1.msra.mxu0 0.0
        %945 = vmatprep.subr.mxu0 0.0
        %946 = vmatpush1.msra.mxu0 0.0
        %947 = vmatprep.subr.mxu0 0.0
        %948 = vmatpush1.msra.mxu0 0.0
        %949 = vmatprep.subr.mxu0 0.0
        %950 = vmatpush1.msra.mxu0 0.0
        %951 = vmatprep.subr.mxu0 0.0
        %952 = vmatpush1.msra.mxu0 0.0
        %953 = vmatprep.subr.mxu0 0.0
        %954 = vmatpush1.msra.mxu0 0.0
        %955 = vmatprep.subr.mxu0 0.0
        %956 = vmatpush1.msra.mxu0 0.0
        %957 = vmatprep.mubr.f32.mxu0 0.0
        %958 = vmatmul.mubr.f32.gmra.mrb[0].mxu0 %v708
        %v959 = vpop.f32.mrb[0].mxu0
        %v960 = vadd.f32 0.0, %v959
        %v961 = vpop.f32.mrb[0].mxu0
        %962 = vmatprep.mubr.f32.mxu0 0.0
        %963 = vmatmul.mubr.f32.gmra.mrb[0].mxu0 %v709
        %v964 = vpop.f32.mrb[0].mxu0
        %v965 = vadd.f32 0.0, %v964
        %v966 = vpop.f32.mrb[0].mxu0
        %967 = vdwg.mxu0
        %968 = vmatprep.subr.mxu0 0.0
        %969 = vmatpush1.msra.mxu0 %v860
        %970 = vmatprep.subr.mxu0 0.0
        %971 = vmatpush1.msra.mxu0 %v861
        %972 = vmatprep.subr.mxu0 0.0
        %973 = vmatpush1.msra.mxu0 %v862
        %974 = vmatprep.subr.mxu0 0.0
        %975 = vmatpush1.msra.mxu0 %v863
        %976 = vmatprep.subr.mxu0 0.0
        %977 = vmatpush1.msra.mxu0 %v864
        %978 = vmatprep.subr.mxu0 0.0
        %979 = vmatpush1.msra.mxu0 %v865
        %980 = vmatprep.subr.mxu0 0.0
        %981 = vmatpush1.msra.mxu0 %v866
        %982 = vmatprep.subr.mxu0 0.0
        %983 = vmatpush1.msra.mxu0 %v867
        %984 = vmatprep.subr.mxu0 0.0
        %985 = vmatpush1.msra.mxu0 %v868
        %986 = vmatprep.subr.mxu0 0.0
        %987 = vmatpush1.msra.mxu0 %v869
        %988 = vmatprep.subr.mxu0 0.0
        %989 = vmatpush1.msra.mxu0 %v870
        %990 = vmatprep.subr.mxu0 0.0
        %991 = vmatpush1.msra.mxu0 %v871
        %992 = vmatprep.subr.mxu0 0.0
        %993 = vmatpush1.msra.mxu0 %v872
        %994 = vmatprep.subr.mxu0 0.0
        %995 = vmatpush1.msra.mxu0 %v873
        %996 = vmatprep.subr.mxu0 0.0
        %997 = vmatpush1.msra.mxu0 %v874
        %998 = vmatprep.subr.mxu0 0.0
        %999 = vmatpush1.msra.mxu0 %v875
        %1000 = vmatprep.subr.mxu0 0.0
        %1001 = vmatpush1.msra.mxu0 0.0
        %1002 = vmatprep.subr.mxu0 0.0
        %1003 = vmatpush1.msra.mxu0 0.0
        %1004 = vmatprep.subr.mxu0 0.0
        %1005 = vmatpush1.msra.mxu0 0.0
        %1006 = vmatprep.subr.mxu0 0.0
        %1007 = vmatpush1.msra.mxu0 0.0
        %1008 = vmatprep.subr.mxu0 0.0
        %1009 = vmatpush1.msra.mxu0 0.0
        %1010 = vmatprep.subr.mxu0 0.0
        %1011 = vmatpush1.msra.mxu0 0.0
        %1012 = vmatprep.subr.mxu0 0.0
        %1013 = vmatpush1.msra.mxu0 0.0
        %1014 = vmatprep.subr.mxu0 0.0
        %1015 = vmatpush1.msra.mxu0 0.0
        %1016 = vmatprep.subr.mxu0 0.0
        %1017 = vmatpush1.msra.mxu0 0.0
        %1018 = vmatprep.subr.mxu0 0.0
        %1019 = vmatpush1.msra.mxu0 0.0
        %1020 = vmatprep.subr.mxu0 0.0
        %1021 = vmatpush1.msra.mxu0 0.0
        %1022 = vmatprep.subr.mxu0 0.0
        %1023 = vmatpush1.msra.mxu0 0.0
        %1024 = vmatprep.subr.mxu0 0.0
        %1025 = vmatpush1.msra.mxu0 0.0
        %1026 = vmatprep.subr.mxu0 0.0
        %1027 = vmatpush1.msra.mxu0 0.0
        %1028 = vmatprep.subr.mxu0 0.0
        %1029 = vmatpush1.msra.mxu0 0.0
        %1030 = vmatprep.subr.mxu0 0.0
        %1031 = vmatpush1.msra.mxu0 0.0
        %1032 = vmatprep.mubr.f32.mxu0 0.0
        %1033 = vmatmul.mubr.f32.gmra.mrb[0].mxu0 %v777
        %v1034 = vpop.f32.mrb[0].mxu0
        %v1035 = vadd.f32 %v960, %v1034
        %v1036 = vpop.f32.mrb[0].mxu0
        %1037 = vmatprep.mubr.f32.mxu0 0.0
        %1038 = vmatmul.mubr.f32.gmra.mrb[0].mxu0 %v782
        %v1039 = vpop.f32.mrb[0].mxu0
        %v1040 = vadd.f32 %v965, %v1039
        %v1041 = vpop.f32.mrb[0].mxu0
        %1042 = vdwg.mxu0
        %s1043 = scalar_lea.vmem %s3, 256
        %v1044 = vld [vmem:[%s1043] sm:$0xff]
        %v1045 = vld [vmem:[%s1043 + $0x8] sm:$0xff]
        %v1046 = vld [vmem:[%s1043 + $0x10] sm:$0xff]
        %v1047 = vld [vmem:[%s1043 + $0x18] sm:$0xff]
        %v1048 = vld [vmem:[%s1043 + $0x20] sm:$0xff]
        %v1049 = vld [vmem:[%s1043 + $0x28] sm:$0xff]
        %v1050 = vld [vmem:[%s1043 + $0x30] sm:$0xff]
        %v1051 = vld [vmem:[%s1043 + $0x38] sm:$0xff]
        %v1052 = vld [vmem:[%s1043 + $0x40] sm:$0xff]
        %v1053 = vld [vmem:[%s1043 + $0x48] sm:$0xff]
        %v1054 = vld [vmem:[%s1043 + $0x50] sm:$0xff]
        %v1055 = vld [vmem:[%s1043 + $0x58] sm:$0xff]
        %v1056 = vld [vmem:[%s1043 + $0x60] sm:$0xff]
        %v1057 = vld [vmem:[%s1043 + $0x68] sm:$0xff]
        %v1058 = vld [vmem:[%s1043 + $0x70] sm:$0xff]
        %v1059 = vld [vmem:[%s1043 + $0x78] sm:$0xff]
        %1060 = vmatprep.subr.mxu0 0.0
        %1061 = vmatpush1.msra.mxu0 %v1044
        %1062 = vmatprep.subr.mxu0 0.0
        %1063 = vmatpush1.msra.mxu0 %v1045
        %1064 = vmatprep.subr.mxu0 0.0
        %1065 = vmatpush1.msra.mxu0 %v1046
        %1066 = vmatprep.subr.mxu0 0.0
        %1067 = vmatpush1.msra.mxu0 %v1047
        %1068 = vmatprep.subr.mxu0 0.0
        %1069 = vmatpush1.msra.mxu0 %v1048
        %1070 = vmatprep.subr.mxu0 0.0
        %1071 = vmatpush1.msra.mxu0 %v1049
        %1072 = vmatprep.subr.mxu0 0.0
        %1073 = vmatpush1.msra.mxu0 %v1050
        %1074 = vmatprep.subr.mxu0 0.0
        %1075 = vmatpush1.msra.mxu0 %v1051
        %1076 = vmatprep.subr.mxu0 0.0
        %1077 = vmatpush1.msra.mxu0 %v1052
        %1078 = vmatprep.subr.mxu0 0.0
        %1079 = vmatpush1.msra.mxu0 %v1053
        %1080 = vmatprep.subr.mxu0 0.0
        %1081 = vmatpush1.msra.mxu0 %v1054
        %1082 = vmatprep.subr.mxu0 0.0
        %1083 = vmatpush1.msra.mxu0 %v1055
        %1084 = vmatprep.subr.mxu0 0.0
        %1085 = vmatpush1.msra.mxu0 %v1056
        %1086 = vmatprep.subr.mxu0 0.0
        %1087 = vmatpush1.msra.mxu0 %v1057
        %1088 = vmatprep.subr.mxu0 0.0
        %1089 = vmatpush1.msra.mxu0 %v1058
        %1090 = vmatprep.subr.mxu0 0.0
        %1091 = vmatpush1.msra.mxu0 %v1059
        %1092 = vmatprep.subr.mxu0 0.0
        %1093 = vmatpush1.msra.mxu0 0.0
        %1094 = vmatprep.subr.mxu0 0.0
        %1095 = vmatpush1.msra.mxu0 0.0
        %1096 = vmatprep.subr.mxu0 0.0
        %1097 = vmatpush1.msra.mxu0 0.0
        %1098 = vmatprep.subr.mxu0 0.0
        %1099 = vmatpush1.msra.mxu0 0.0
        %1100 = vmatprep.subr.mxu0 0.0
        %1101 = vmatpush1.msra.mxu0 0.0
        %1102 = vmatprep.subr.mxu0 0.0
        %1103 = vmatpush1.msra.mxu0 0.0
        %1104 = vmatprep.subr.mxu0 0.0
        %1105 = vmatpush1.msra.mxu0 0.0
        %1106 = vmatprep.subr.mxu0 0.0
        %1107 = vmatpush1.msra.mxu0 0.0
        %1108 = vmatprep.subr.mxu0 0.0
        %1109 = vmatpush1.msra.mxu0 0.0
        %1110 = vmatprep.subr.mxu0 0.0
        %1111 = vmatpush1.msra.mxu0 0.0
        %1112 = vmatprep.subr.mxu0 0.0
        %1113 = vmatpush1.msra.mxu0 0.0
        %1114 = vmatprep.subr.mxu0 0.0
        %1115 = vmatpush1.msra.mxu0 0.0
        %1116 = vmatprep.subr.mxu0 0.0
        %1117 = vmatpush1.msra.mxu0 0.0
        %1118 = vmatprep.subr.mxu0 0.0
        %1119 = vmatpush1.msra.mxu0 0.0
        %1120 = vmatprep.subr.mxu0 0.0
        %1121 = vmatpush1.msra.mxu0 0.0
        %1122 = vmatprep.subr.mxu0 0.0
        %1123 = vmatpush1.msra.mxu0 0.0
        %1124 = vmatprep.mubr.f32.mxu0 0.0
        %1125 = vmatmul.mubr.f32.gmra.mrb[0].mxu0 %v852
        %v1126 = vpop.f32.mrb[0].mxu0
        %v1127 = vadd.f32 0.0, %v1126
        %v1128 = vpop.f32.mrb[0].mxu0
        %1129 = vmatprep.mubr.f32.mxu0 0.0
        %1130 = vmatmul.mubr.f32.gmra.mrb[0].mxu0 %v857
        %v1131 = vpop.f32.mrb[0].mxu0
        %v1132 = vadd.f32 0.0, %v1131
        %v1133 = vpop.f32.mrb[0].mxu0
        %1134 = vdwg.mxu0
        %v1135 = vadd.f32 %v1035, %v1127
        %v1136 = vadd.f32 %v1040, %v1132
        %v1137 = vld [vmem:[%s4] sm:$0x1]
        %v1139 = vlaneseq
        %v1140 = vshrl.u32 %v1139, 7
        %v1141 = vsub.s32 0, %v1140
        %v1142 = vrot.slane %v1137, %v1141
        %v1144 = vadd.f32 %v1135, %v1142
        %v1145 = vadd.f32 %v1136, %v1142
        %v1146 = vmax.f32 %v1144, 0.0
        %v1147 = vmax.f32 %v1145, 0.0
        %1148 = vst [vmem:[%s239] sm:$0xff] %v1146
        %1149 = vst [vmem:[%s239 + $0x8] sm:$0xff] %v1147
        %s1150 = smul.u32 2, %s17
        %p1151 = scmp.lt.s32.totalorder %s1150, 3
        %s1152 = scalar_select %p1151, %s1150, 3
        %s1153 = smul.addr %s1152, 8
        %s1154 = scalar_lea.vmem %s5, %s1153
        // Predicated region
        $region45: #{double_conv.1} parent=39 // pred_check
          %p1155 = pneg %p145
        $region46: #{double_conv.1} parent=39 // pred_check_branch
          %1157 = sbr.rel (%p1155) target = $region48
        $region47: #{double_conv.1} parent=39 // pred_region
          %s1158 = smul.u32 2, %s17
        $region48: #{double_conv.1} parent=39 // pred_fallthru
          _
      $region40: #{double_conv.1} parent=5 // pred_fallthru
        _
      %p1159 = scmp.le.s32.totalorder 2, %s12
      // Predicated region
      $region49: #{double_conv.1} parent=5 // pred_check
        %p1160 = pneg %p1159
      $region50: #{double_conv.1} parent=5 // pred_check_branch
        %1162 = sbr.rel (%p1160) target = $region52
      $region51: #{double_conv.1} parent=5 // pred_region
        %s1163 = ssub.s32 %s12, 2
        // Predicated region
        $region53: #{double_conv.1} parent=51 // pred_check
          %p1164 = pneg %p151
        $region54: #{double_conv.1} parent=51 // pred_check_branch
          %1166 = sbr.rel (%p1164) target = $region56
        $region55: #{double_conv.1} parent=51 // pred_region
          %s1167 = smul.u32 2, %s18
          %p1168 = scmp.lt.s32.totalorder %s1167, 3
          %s1169 = scalar_select %p1168, %s1167, 3
          %s1170 = smul.addr %s1169, 8
          %s1171 = scalar_lea.vmem %s5, %s1170
        $region56: #{double_conv.1} parent=51 // pred_fallthru
          _
      $region52: #{double_conv.1} parent=5 // pred_fallthru
        _
    $region6: #{double_conv.1} parent=1 // loop_footer
      %s16 = sadd.s32 1, %s12
    $region7: #{double_conv.1} parent=1 // loop_footer_branch
      %11 = sbr.rel target = $region3
    $region8: #{double_conv.1} parent=1 // loop_exit
      _
    %1172 = vsyncpa [#allocation3], 1
    %s1173 = scalar_lea.sflag [#allocation3], 1
    %1174 = vsyncpa %s1173, 1

</llo_original>
